<compile_context>
chip_gen: v5e
topology: v5e:2x2
jax: 0.10.0
libtpu: 0.0.40
codegen_flags: <defaults>
</compile_context>

<pallas_src>
import jax
import jax.numpy as jnp
from jax.experimental import pallas as pl
from jax.experimental.pallas import tpu as pltpu


def _dae_kernel(x_ref, w1_ref, b1_ref, w2_ref, b2_ref, o_ref, h_ref):
    """One batch tile: h = clamp(x @ W1 + b1, 0, 1); o = h @ W2 + b2."""
    # x_ref already holds the noised activations; cast to the MXU operand dtype.
    xc = x_ref[...].astype(w1_ref.dtype)
    h = jnp.dot(xc, w1_ref[...], preferred_element_type=jnp.float32) + b1_ref[...]
    h = jnp.clip(h, 0.0, 1.0)
    h_ref[...] = h.astype(h_ref.dtype)
    # Second matmul consumes the same h that is stored, so (o, h) stay consistent.
    o = jnp.dot(h.astype(w2_ref.dtype), w2_ref[...],
                preferred_element_type=jnp.float32) + b2_ref[...]
    o_ref[...] = o.astype(o_ref.dtype)


def _num_tensorcores():
    """TensorCores addressable by one pallas_call. v5e/v6e: 1, v7x (and v4/v5p): 2."""
    try:
        dev = jax.devices()[0]
        if dev.platform != "tpu":
            return 1
        kind = str(getattr(dev, "device_kind", "")).lower().replace(" ", "")
        return 2 if any(t in kind for t in ("v7", "v4", "v5p")) else 1
    except Exception:
        return 1


def _vmem_cap_bytes():
    """~80% of physical VMEM; assume the smallest (v7x, 64 MiB) if unknown."""
    cap = 64 << 20
    try:
        cap = int(getattr(pltpu.get_tpu_info(), "vmem_capacity_bytes", cap))
    except Exception:
        pass
    return int(0.8 * cap)


def _choose_bm(batch, *, sublane, cap=512, num_cores=1):
    """Largest batch tile that divides `batch`, is a sublane multiple and <= cap.

    On 2-TensorCore chips, prefer a tile that gives an even grid length so the
    ("parallel",) grid splits evenly across cores; on single-TC chips never
    shrink the tile just to add grid steps (they are a sequential loop there).
    """
    divisors = [d for d in range(sublane, min(batch, cap) + 1, sublane)
                if batch % d == 0]
    if not divisors:
        return sublane
    if num_cores > 1:
        balanced = [d for d in divisors if (batch // d) % num_cores == 0]
        if balanced:
            return max(balanced)
    return max(divisors)


def denoising_autoencoder_forward(x, w1, b1, w2, b2, *, noise_std=0.4, key=None,
                                  bm=None, compute_dtype=jnp.bfloat16):
    """Pallas forward. x:(B,D), w1:(D,S), b1:(.,S), w2:(S,D), b2:(.,D) -> (o, h)."""
    B, D = x.shape
    S = w1.shape[1]
    assert B % 8 == 0, "batch must be a multiple of the f32 sublane tile (8)"
    out_dtype = x.dtype

    # Denoising noise (torch.normal(0, std, x.size())) is generated here with
    # jax.random and fused into x before the kernel.
    # TODO(synk): move noise generation back on-chip (pltpu.prng_seed +
    # stateful_normal) once the target runtime lowers the TPU PRNG primitives.
    if noise_std:
        if key is None:
            key = jax.random.PRNGKey(0)
        x = x + jnp.asarray(noise_std, x.dtype) * jax.random.normal(key, x.shape, x.dtype)

    cd = jnp.dtype(compute_dtype)
    # Stream the noised activations at compute precision when the bf16 sublane
    # tile (16 rows) divides the batch; otherwise stream f32 and cast in-kernel.
    if cd.itemsize == 2 and B % 16 == 0:
        x_in, sublane = x.astype(cd), 16
    else:
        x_in, sublane = x.astype(jnp.float32), 8
    w1c = w1.astype(cd)
    w2c = w2.astype(cd)
    b1f = jnp.asarray(b1, jnp.float32).reshape(1, S)
    b2f = jnp.asarray(b2, jnp.float32).reshape(1, D)

    cores = _num_tensorcores()
    if bm is None:
        bm = _choose_bm(B, sublane=sublane, cap=512, num_cores=cores)
    assert B % bm == 0 and bm % sublane == 0
    grid = (B // bm,)

    # Both weight matrices stay VMEM-resident (constant index_maps).
    # TODO(synk): tile over S (accumulating the 2nd matmul) once the resident
    # weights outgrow the VMEM cap; at D=128, S=256 in bf16 they are ~128 KiB.
    out_itemsize = jnp.dtype(out_dtype).itemsize
    resident = (w1c.size + w2c.size) * cd.itemsize + (S + D) * 4
    streamed = 2 * (bm * D * x_in.dtype.itemsize      # x tile (double-buffered)
                    + bm * D * out_itemsize           # o tile
                    + bm * S * out_itemsize)          # h tile
    vmem_budget = int(min(_vmem_cap_bytes(),
                          max(32 << 20, 4 * resident + 2 * streamed)))

    flops = 4 * B * D * S                             # two matmuls, forward only
    bytes_accessed = (x_in.size * x_in.dtype.itemsize + resident
                      + B * D * out_itemsize + B * S * out_itemsize)

    out_shapes = (
        jax.ShapeDtypeStruct((B, D), out_dtype),      # o
        jax.ShapeDtypeStruct((B, S), out_dtype),      # h
    )
    return pl.pallas_call(
        _dae_kernel,
        out_shape=out_shapes,
        grid_spec=pltpu.PrefetchScalarGridSpec(
            num_scalar_prefetch=0,
            grid=grid,
            in_specs=[
                pl.BlockSpec((bm, D), lambda i: (i, 0)),   # noised x tile
                pl.BlockSpec((D, S), lambda i: (0, 0)),    # W1 (VMEM-resident)
                pl.BlockSpec((1, S), lambda i: (0, 0)),    # b1
                pl.BlockSpec((S, D), lambda i: (0, 0)),    # W2 (VMEM-resident)
                pl.BlockSpec((1, D), lambda i: (0, 0)),    # b2
            ],
            out_specs=[
                pl.BlockSpec((bm, D), lambda i: (i, 0)),   # o tile
                pl.BlockSpec((bm, S), lambda i: (i, 0)),   # h tile
            ],
        ),
        compiler_params=pltpu.CompilerParams(
            dimension_semantics=("parallel",),
            vmem_limit_bytes=vmem_budget,
        ),
        cost_estimate=pl.CostEstimate(
            flops=int(flops), transcendentals=0, bytes_accessed=int(bytes_accessed)),
    )(x_in, w1c, b1f, w2c, b2f)


if __name__ == "__main__":
    # Small shapes consistent with the module: input_dim=128, sparse_dim=256,
    # batch=256 (fills the MXU M dimension; even grid when split for 2 TCs).
    B, D, S = 256, 128, 256
    noise_std = 0.4

    key = jax.random.PRNGKey(0)
    kx, kw1, kb1, kw2, kb2, knoise = jax.random.split(key, 6)

    x = jax.random.normal(kx, (B, D), dtype=jnp.float32)

    # nn.Linear-style uniform init, stored transposed so the kernel does x @ W.
    bound1 = 1.0 / jnp.sqrt(D)
    w1 = jax.random.uniform(kw1, (D, S), jnp.float32, -bound1, bound1)
    b1 = jax.random.uniform(kb1, (1, S), jnp.float32, -bound1, bound1)
    bound2 = 1.0 / jnp.sqrt(S)
    w2 = jax.random.uniform(kw2, (S, D), jnp.float32, -bound2, bound2)
    b2 = jax.random.uniform(kb2, (1, D), jnp.float32, -bound2, bound2)

    # 1) noise disabled, f32 compute path: check against a pure-JAX reference.
    o0, h0 = denoising_autoencoder_forward(
        x, w1, b1, w2, b2, noise_std=0.0, compute_dtype=jnp.float32)
    jax.block_until_ready((o0, h0))
    h_ref = jnp.clip(jnp.dot(x, w1, preferred_element_type=jnp.float32) + b1, 0.0, 1.0)
    o_ref = jnp.dot(h_ref, w2, preferred_element_type=jnp.float32) + b2
    assert jnp.allclose(h0, h_ref, atol=2e-3, rtol=2e-3)
    assert jnp.allclose(o0, o_ref, atol=2e-3, rtol=2e-3)

    # 2) default bf16 MXU path with noise: reference applies the same casts.
    o, h = denoising_autoencoder_forward(
        x, w1, b1, w2, b2, noise_std=noise_std, key=knoise)
    jax.block_until_ready((o, h))
    xn = x + noise_std * jax.random.normal(knoise, x.shape, x.dtype)
    hb = jnp.clip(jnp.dot(xn.astype(jnp.bfloat16), w1.astype(jnp.bfloat16),
                          preferred_element_type=jnp.float32) + b1, 0.0, 1.0)
    ob = jnp.dot(hb.astype(jnp.bfloat16), w2.astype(jnp.bfloat16),
                 preferred_element_type=jnp.float32) + b2
    assert bool(jnp.all(h >= 0.0)) and bool(jnp.all(h <= 1.0))    # clamp respected
    assert jnp.allclose(h, hb, atol=2e-2, rtol=2e-2)
    assert jnp.allclose(o, ob, atol=2e-2, rtol=2e-2)
    assert not bool(jnp.allclose(h, h0, atol=1e-3))               # noise actually injected

    print("KERNEL_OK")
</pallas_src>

<mosaic_0001>
module attributes {stable_mosaic.version = 11 : i64} {
  func.func @_dae_kernel(%arg0: i32, %arg1: memref<256x128xf32, #tpu.memory_space<vmem>>, %arg2: memref<128x256xf32, #tpu.memory_space<vmem>>, %arg3: memref<1x256xf32, #tpu.memory_space<vmem>>, %arg4: memref<256x128xf32, #tpu.memory_space<vmem>>, %arg5: memref<1x128xf32, #tpu.memory_space<vmem>>, %arg6: memref<256x128xf32, #tpu.memory_space<vmem>>, %arg7: memref<256x256xf32, #tpu.memory_space<vmem>>) attributes {dimension_semantics = [#tpu.dimension_semantics<parallel>], iteration_bounds = array<i64: 1>, scalar_prefetch = 0 : i64, scratch_operands = 0 : i64, tpu.core_type = #tpu.core_type<tc>, window_params = [{transform_indices = @transform_0, window_bounds = array<i64: 256, 128>}, {pipeline_mode = #tpu.pipeline_mode<synchronous>, transform_indices = @transform_1, window_bounds = array<i64: 128, 256>}, {pipeline_mode = #tpu.pipeline_mode<synchronous>, transform_indices = @transform_2, window_bounds = array<i64: 1, 256>}, {pipeline_mode = #tpu.pipeline_mode<synchronous>, transform_indices = @transform_3, window_bounds = array<i64: 256, 128>}, {pipeline_mode = #tpu.pipeline_mode<synchronous>, transform_indices = @transform_4, window_bounds = array<i64: 1, 128>}, {transform_indices = @transform_5, window_bounds = array<i64: 256, 128>}, {transform_indices = @transform_6, window_bounds = array<i64: 256, 256>}]} {
    %c0 = arith.constant 0 : index
    %c0_0 = arith.constant 0 : index
    %0 = vector.load %arg1[%c0, %c0_0] : memref<256x128xf32, #tpu.memory_space<vmem>>, vector<256x128xf32>
    %c0_1 = arith.constant 0 : index
    %c0_2 = arith.constant 0 : index
    %1 = vector.load %arg2[%c0_1, %c0_2] : memref<128x256xf32, #tpu.memory_space<vmem>>, vector<128x256xf32>
    %cst = arith.constant dense<0.000000e+00> : vector<256x256xf32>
    %2 = tpu.matmul %0, %1, %cst {dimension_numbers = #tpu.dot_dimension_numbers<[1], [0], [0], [1], [0, 0, 1, 1], [], []>} : vector<256x128xf32>, vector<128x256xf32>, vector<256x256xf32> -> vector<256x256xf32>
    %c0_3 = arith.constant 0 : index
    %c0_4 = arith.constant 0 : index
    %3 = vector.load %arg3[%c0_3, %c0_4] : memref<1x256xf32, #tpu.memory_space<vmem>>, vector<1x256xf32>
    %4 = vector.broadcast %3 : vector<1x256xf32> to vector<256x256xf32>
    %5 = arith.addf %2, %4 : vector<256x256xf32>
    %cst_5 = arith.constant 0.000000e+00 : f32
    %cst_6 = arith.constant 1.000000e+00 : f32
    %6 = vector.broadcast %cst_5 : f32 to vector<256x256xf32>
    %7 = arith.maximumf %6, %5 : vector<256x256xf32>
    %8 = vector.broadcast %cst_6 : f32 to vector<256x256xf32>
    %9 = arith.minimumf %8, %7 : vector<256x256xf32>
    %c0_7 = arith.constant 0 : index
    %c0_8 = arith.constant 0 : index
    %10 = vector.load %arg7[%c0_7, %c0_8] : memref<256x256xf32, #tpu.memory_space<vmem>>, vector<256x256xf32>
    tpu.vector_store %arg7[%c0_7, %c0_8], %9 {strides = array<i32>} : memref<256x256xf32, #tpu.memory_space<vmem>>, vector<256x256xf32>,
    %c0_9 = arith.constant 0 : index
    %c0_10 = arith.constant 0 : index
    %11 = vector.load %arg4[%c0_9, %c0_10] : memref<256x128xf32, #tpu.memory_space<vmem>>, vector<256x128xf32>
    %cst_11 = arith.constant dense<0.000000e+00> : vector<256x128xf32>
    %12 = tpu.matmul %9, %11, %cst_11 {dimension_numbers = #tpu.dot_dimension_numbers<[1], [0], [0], [1], [0, 0, 1, 1], [], []>} : vector<256x256xf32>, vector<256x128xf32>, vector<256x128xf32> -> vector<256x128xf32>
    %c0_12 = arith.constant 0 : index
    %c0_13 = arith.constant 0 : index
    %13 = vector.load %arg5[%c0_12, %c0_13] : memref<1x128xf32, #tpu.memory_space<vmem>>, vector<1x128xf32>
    %14 = vector.broadcast %13 : vector<1x128xf32> to vector<256x128xf32>
    %15 = arith.addf %12, %14 : vector<256x128xf32>
    %c0_14 = arith.constant 0 : index
    %c0_15 = arith.constant 0 : index
    %16 = vector.load %arg6[%c0_14, %c0_15] : memref<256x128xf32, #tpu.memory_space<vmem>>, vector<256x128xf32>
    tpu.vector_store %arg6[%c0_14, %c0_15], %15 {strides = array<i32>} : memref<256x128xf32, #tpu.memory_space<vmem>>, vector<256x128xf32>,
    return
  }
  func.func @transform_0(%arg0: i32) -> (i32, i32) {
    %c0_i32 = arith.constant 0 : i32
    %c0_i32_0 = arith.constant 0 : i32
    return %arg0, %c0_i32 : i32, i32
  }
  func.func @transform_1(%arg0: i32) -> (i32, i32) {
    %c0_i32 = arith.constant 0 : i32
    %c0_i32_0 = arith.constant 0 : i32
    %c0_i32_1 = arith.constant 0 : i32
    return %c0_i32, %c0_i32_0 : i32, i32
  }
  func.func @transform_2(%arg0: i32) -> (i32, i32) {
    %c0_i32 = arith.constant 0 : i32
    %c0_i32_0 = arith.constant 0 : i32
    %c0_i32_1 = arith.constant 0 : i32
    return %c0_i32, %c0_i32_0 : i32, i32
  }
  func.func @transform_3(%arg0: i32) -> (i32, i32) {
    %c0_i32 = arith.constant 0 : i32
    %c0_i32_0 = arith.constant 0 : i32
    %c0_i32_1 = arith.constant 0 : i32
    return %c0_i32, %c0_i32_0 : i32, i32
  }
  func.func @transform_4(%arg0: i32) -> (i32, i32) {
    %c0_i32 = arith.constant 0 : i32
    %c0_i32_0 = arith.constant 0 : i32
    %c0_i32_1 = arith.constant 0 : i32
    return %c0_i32, %c0_i32_0 : i32, i32
  }
  func.func @transform_5(%arg0: i32) -> (i32, i32) {
    %c0_i32 = arith.constant 0 : i32
    %c0_i32_0 = arith.constant 0 : i32
    return %arg0, %c0_i32 : i32, i32
  }
  func.func @transform_6(%arg0: i32) -> (i32, i32) {
    %c0_i32 = arith.constant 0 : i32
    %c0_i32_0 = arith.constant 0 : i32
    return %arg0, %c0_i32 : i32, i32
  }
}

</mosaic_0001>

<llo_original>
// kernel: tpu_custom_call.1
$region0: #{tpu_custom_call.1}
  #allocation0 [shape = 'u32[]', space=smem, size = 0x4, offset = 0x4, fixed_abs, tag = 'smem constant byte address 0x4 - core index']
  #allocation1 [shape = 'u32[72,128]{1,0:T(1,128)}', space=vmem, size = 0x9000, scoped, tag = 'internal scratch']
  %s0 = inlined_call_operand.hbm [shape: f32[256,128], index: 0, kind: input, shape index: {}]
  %s1 = inlined_call_operand.hbm [shape: f32[128,256], index: 1, kind: input, shape index: {}]
  %s2 = inlined_call_operand.hbm [shape: f32[1,256], index: 2, kind: input, shape index: {}]
  %s3 = inlined_call_operand.hbm [shape: f32[256,128], index: 3, kind: input, shape index: {}]
  %s4 = inlined_call_operand.vmem [shape: f32[1,128], index: 4, kind: input, shape index: {}]
  %s5 = inlined_call_operand.hbm [shape: f32[256,128], index: 5, kind: output, shape index: {0}]
  %s6 = inlined_call_operand.hbm [shape: f32[256,256], index: 6, kind: output, shape index: {1}]
  %7 = xla_tuple %s5, %s6
  %s8 = sld [smem:[#allocation0]]
  $region54: #{tpu_custom_call.1} parent=0
    _
  %s10 = ssub.s32 1, %s8
  %s11 = scalar_select 0, %s10, %s8
  $region1: #{tpu_custom_call.1} parent=0
    #allocation2 [shape = 'u8[131072]{0}', space=vmem, size = 0x20000, scoped, tag = 'input window, operand 0, single buffered']
    #allocation3 [shape = 's32[1]{0}', space=sflag, size = 0x4, scoped, tag = 'scoped memory for tpu_custom_call.1']
    #allocation4 [shape = 's32[1]{0}', space=sflag, size = 0x4, scoped, tag = 'scoped memory for tpu_custom_call.1']
    #allocation5 [shape = 'u8[131072]{0}', space=vmem, size = 0x20000, scoped, tag = 'input window, operand 1, single buffered']
    #allocation6 [shape = 's32[1]{0}', space=sflag, size = 0x4, scoped, tag = 'scoped memory for tpu_custom_call.1']
    #allocation7 [shape = 'u8[1024]{0}', space=vmem, size = 0x400, scoped, tag = 'input window, operand 2, single buffered']
    #allocation8 [shape = 'u8[131072]{0}', space=vmem, size = 0x20000, scoped, tag = 'input window, operand 3, single buffered']
    #allocation9 [shape = 's32[1]{0}', space=sflag, size = 0x4, scoped, tag = 'scoped memory for tpu_custom_call.1']
    #allocation10 [shape = 'u8[131072]{0}', space=vmem, size = 0x20000, scoped, tag = 'output window, operand 0, single buffered']
    #allocation11 [shape = 'u8[262144]{0}', space=vmem, size = 0x40000, scoped, tag = 'output window, operand 1, single buffered']
    #allocation12 [shape = 's32[1]{0}', space=sflag, size = 0x4, scoped, tag = 'scoped memory for tpu_custom_call.1']
    %12 = vsyncpa [#allocation3], 0
    %13 = vsyncpa [#allocation6], 0
    %14 = vsyncpa [#allocation9], 0
    %15 = vsyncpa [#allocation4], 0
    %16 = vsyncpa [#allocation12], 0
    // Predicated region
    $region2: #{tpu_custom_call.1} parent=1 // pred_check
      _
    $region3: #{tpu_custom_call.1} parent=1 // pred_check_branch
      %18 = sbr.rel (0) target = $region5
    $region4: #{tpu_custom_call.1} parent=1 // pred_region
      %20 = vsyncadd [#allocation3], 0
      %s21 = sshll.u32 %s0, 4
      %s22 = int_to_ptr.hbm [resolvable:$true] %s21
      %s23 = sshll.u32 [#allocation2], 4
      %s24 = int_to_ptr.vmem [resolvable:$true] %s23
      %29 = dma.hbm_to_vmem [thread:$0]  %s22, 4096, %s24, [#allocation3], 128, 128, 8
    $region5: #{tpu_custom_call.1} parent=1 // pred_fallthru
      _
    // Predicated region
    $region6: #{tpu_custom_call.1} parent=1 // pred_check
      _
    $region7: #{tpu_custom_call.1} parent=1 // pred_check_branch
      %31 = sbr.rel (0) target = $region9
    $region8: #{tpu_custom_call.1} parent=1 // pred_region
      %33 = vsyncadd [#allocation6], 0
      %s34 = sshll.u32 %s1, 4
      %s35 = int_to_ptr.hbm [resolvable:$true] %s34
      %s36 = sshll.u32 [#allocation5], 4
      %s37 = int_to_ptr.vmem [resolvable:$true] %s36
      %42 = dma.hbm_to_vmem [thread:$0]  %s35, 4096, %s37, [#allocation6], 256, 256, 16
    $region9: #{tpu_custom_call.1} parent=1 // pred_fallthru
      _
    // Predicated region
    $region10: #{tpu_custom_call.1} parent=1 // pred_check
      _
    $region11: #{tpu_custom_call.1} parent=1 // pred_check_branch
      %44 = sbr.rel (0) target = $region13
    $region12: #{tpu_custom_call.1} parent=1 // pred_region
      %46 = vsyncadd [#allocation6], 0
      %s48 = sshll.u32 %s2, 4
      %s49 = int_to_ptr.hbm [resolvable:$true] %s48
      %s50 = sshll.u32 [#allocation7], 4
      %s51 = int_to_ptr.vmem [resolvable:$true] %s50
      %53 = dma.hbm_to_vmem [thread:$0]  %s49, 32, %s51, [#allocation6]
    $region13: #{tpu_custom_call.1} parent=1 // pred_fallthru
      _
    // Predicated region
    $region14: #{tpu_custom_call.1} parent=1 // pred_check
      _
    $region15: #{tpu_custom_call.1} parent=1 // pred_check_branch
      %55 = sbr.rel (0) target = $region17
    $region16: #{tpu_custom_call.1} parent=1 // pred_region
      %57 = vsyncadd [#allocation9], 0
      %s58 = sshll.u32 %s3, 4
      %s59 = int_to_ptr.hbm [resolvable:$true] %s58
      %s60 = sshll.u32 [#allocation8], 4
      %s61 = int_to_ptr.vmem [resolvable:$true] %s60
      %66 = dma.hbm_to_vmem [thread:$0]  %s59, 4096, %s61, [#allocation9], 128, 128, 8
    $region17: #{tpu_custom_call.1} parent=1 // pred_fallthru
      _
    // Predicated region
    $region18: #{tpu_custom_call.1} parent=1 // pred_check
      _
    $region19: #{tpu_custom_call.1} parent=1 // pred_check_branch
      %68 = sbr.rel (0) target = $region21
    $region20: #{tpu_custom_call.1} parent=1 // pred_region
      _
    $region21: #{tpu_custom_call.1} parent=1 // pred_fallthru
      _
    // Predicated region
    $region22: #{tpu_custom_call.1} parent=1 // pred_check
      _
    $region23: #{tpu_custom_call.1} parent=1 // pred_check_branch
      %70 = sbr.rel (0) target = $region25
    $region24: #{tpu_custom_call.1} parent=1 // pred_region
      %72 = dma.done [#allocation3], 4096
    $region25: #{tpu_custom_call.1} parent=1 // pred_fallthru
      _
    // Predicated region
    $region26: #{tpu_custom_call.1} parent=1 // pred_check
      _
    $region27: #{tpu_custom_call.1} parent=1 // pred_check_branch
      %74 = sbr.rel (0) target = $region29
    $region28: #{tpu_custom_call.1} parent=1 // pred_region
      %76 = dma.done [#allocation6], 4096
    $region29: #{tpu_custom_call.1} parent=1 // pred_fallthru
      _
    // Predicated region
    $region30: #{tpu_custom_call.1} parent=1 // pred_check
      _
    $region31: #{tpu_custom_call.1} parent=1 // pred_check_branch
      %78 = sbr.rel (0) target = $region33
    $region32: #{tpu_custom_call.1} parent=1 // pred_region
      %80 = dma.done [#allocation6], 32
    $region33: #{tpu_custom_call.1} parent=1 // pred_fallthru
      _
    // Predicated region
    $region34: #{tpu_custom_call.1} parent=1 // pred_check
      _
    $region35: #{tpu_custom_call.1} parent=1 // pred_check_branch
      %82 = sbr.rel (0) target = $region37
    $region36: #{tpu_custom_call.1} parent=1 // pred_region
      %84 = dma.done [#allocation9], 4096
    $region37: #{tpu_custom_call.1} parent=1 // pred_fallthru
      _
    %v85 = vld [vmem:[#allocation2] sm:$0xff]
    %v86 = vld [vmem:[#allocation2 + $0x8] sm:$0xff]
    %v87 = vld [vmem:[#allocation2 + $0x10] sm:$0xff]
    %v88 = vld [vmem:[#allocation2 + $0x18] sm:$0xff]
    %v89 = vld [vmem:[#allocation2 + $0x20] sm:$0xff]
    %v90 = vld [vmem:[#allocation2 + $0x28] sm:$0xff]
    %v91 = vld [vmem:[#allocation2 + $0x30] sm:$0xff]
    %v92 = vld [vmem:[#allocation2 + $0x38] sm:$0xff]
    %v93 = vld [vmem:[#allocation2 + $0x40] sm:$0xff]
    %v94 = vld [vmem:[#allocation2 + $0x48] sm:$0xff]
    %v95 = vld [vmem:[#allocation2 + $0x50] sm:$0xff]
    %v96 = vld [vmem:[#allocation2 + $0x58] sm:$0xff]
    %v97 = vld [vmem:[#allocation2 + $0x60] sm:$0xff]
    %v98 = vld [vmem:[#allocation2 + $0x68] sm:$0xff]
    %v99 = vld [vmem:[#allocation2 + $0x70] sm:$0xff]
    %v100 = vld [vmem:[#allocation2 + $0x78] sm:$0xff]
    %v101 = vld [vmem:[#allocation2 + $0x80] sm:$0xff]
    %v102 = vld [vmem:[#allocation2 + $0x88] sm:$0xff]
    %v103 = vld [vmem:[#allocation2 + $0x90] sm:$0xff]
    %v104 = vld [vmem:[#allocation2 + $0x98] sm:$0xff]
    %v105 = vld [vmem:[#allocation2 + $0xa0] sm:$0xff]
    %v106 = vld [vmem:[#allocation2 + $0xa8] sm:$0xff]
    %v107 = vld [vmem:[#allocation2 + $0xb0] sm:$0xff]
    %v108 = vld [vmem:[#allocation2 + $0xb8] sm:$0xff]
    %v109 = vld [vmem:[#allocation2 + $0xc0] sm:$0xff]
    %v110 = vld [vmem:[#allocation2 + $0xc8] sm:$0xff]
    %v111 = vld [vmem:[#allocation2 + $0xd0] sm:$0xff]
    %v112 = vld [vmem:[#allocation2 + $0xd8] sm:$0xff]
    %v113 = vld [vmem:[#allocation2 + $0xe0] sm:$0xff]
    %v114 = vld [vmem:[#allocation2 + $0xe8] sm:$0xff]
    %v115 = vld [vmem:[#allocation2 + $0xf0] sm:$0xff]
    %v116 = vld [vmem:[#allocation2 + $0xf8] sm:$0xff]
    %v117 = vld [vmem:[#allocation5] sm:$0xff]
    %v118 = vld [vmem:[#allocation5 + $0x8] sm:$0xff]
    %v119 = vld [vmem:[#allocation5 + $0x10] sm:$0xff]
    %v120 = vld [vmem:[#allocation5 + $0x18] sm:$0xff]
    %v121 = vld [vmem:[#allocation5 + $0x20] sm:$0xff]
    %v122 = vld [vmem:[#allocation5 + $0x28] sm:$0xff]
    %v123 = vld [vmem:[#allocation5 + $0x30] sm:$0xff]
    %v124 = vld [vmem:[#allocation5 + $0x38] sm:$0xff]
    %v125 = vld [vmem:[#allocation5 + $0x40] sm:$0xff]
    %v126 = vld [vmem:[#allocation5 + $0x48] sm:$0xff]
    %v127 = vld [vmem:[#allocation5 + $0x50] sm:$0xff]
    %v128 = vld [vmem:[#allocation5 + $0x58] sm:$0xff]
    %v129 = vld [vmem:[#allocation5 + $0x60] sm:$0xff]
    %v130 = vld [vmem:[#allocation5 + $0x68] sm:$0xff]
    %v131 = vld [vmem:[#allocation5 + $0x70] sm:$0xff]
    %v132 = vld [vmem:[#allocation5 + $0x78] sm:$0xff]
    %v133 = vld [vmem:[#allocation5 + $0x80] sm:$0xff]
    %v134 = vld [vmem:[#allocation5 + $0x88] sm:$0xff]
    %v135 = vld [vmem:[#allocation5 + $0x90] sm:$0xff]
    %v136 = vld [vmem:[#allocation5 + $0x98] sm:$0xff]
    %v137 = vld [vmem:[#allocation5 + $0xa0] sm:$0xff]
    %v138 = vld [vmem:[#allocation5 + $0xa8] sm:$0xff]
    %v139 = vld [vmem:[#allocation5 + $0xb0] sm:$0xff]
    %v140 = vld [vmem:[#allocation5 + $0xb8] sm:$0xff]
    %v141 = vld [vmem:[#allocation5 + $0xc0] sm:$0xff]
    %v142 = vld [vmem:[#allocation5 + $0xc8] sm:$0xff]
    %v143 = vld [vmem:[#allocation5 + $0xd0] sm:$0xff]
    %v144 = vld [vmem:[#allocation5 + $0xd8] sm:$0xff]
    %v145 = vld [vmem:[#allocation5 + $0xe0] sm:$0xff]
    %v146 = vld [vmem:[#allocation5 + $0xe8] sm:$0xff]
    %v147 = vld [vmem:[#allocation5 + $0xf0] sm:$0xff]
    %v148 = vld [vmem:[#allocation5 + $0xf8] sm:$0xff]
    %v149 = vld [vmem:[#allocation7] sm:$0x3]
    %v151 = vperm.slane %v149, 0
    %v152 = vperm.slane %v149, 1
    %155 = vmatpush.msra.mxu0 %v147
    %156 = vmatpush.msra.mxu0 %v145
    %157 = vmatpush.msra.mxu0 %v143
    %158 = vmatpush.msra.mxu0 %v141
    %159 = vmatpush.msra.mxu0 %v139
    %160 = vmatpush.msra.mxu0 %v137
    %161 = vmatpush.msra.mxu0 %v135
    %162 = vmatpush.msra.mxu0 %v133
    %163 = vmatpush.msra.mxu0 %v131
    %164 = vmatpush.msra.mxu0 %v129
    %165 = vmatpush.msra.mxu0 %v127
    %166 = vmatpush.msra.mxu0 %v125
    %167 = vmatpush.msra.mxu0 %v123
    %168 = vmatpush.msra.mxu0 %v121
    %169 = vmatpush.msra.mxu0 %v119
    %170 = vmatpush.msra.mxu0 %v117
    %171 = vmatmul.f32.gmra.mxu0 %v85
    %v172 = vpop.f32.mrf.mxu0
    %v173 = vadd.f32 %v151, %v172
    %174 = vmatmul.f32.gmra.mxu0 %v86
    %v175 = vpop.f32.mrf.mxu0
    %v176 = vadd.f32 %v151, %v175
    %177 = vmatmul.f32.gmra.mxu0 %v87
    %v178 = vpop.f32.mrf.mxu0
    %v179 = vadd.f32 %v151, %v178
    %180 = vmatmul.f32.gmra.mxu0 %v88
    %v181 = vpop.f32.mrf.mxu0
    %v182 = vadd.f32 %v151, %v181
    %183 = vmatmul.f32.gmra.mxu0 %v89
    %v184 = vpop.f32.mrf.mxu0
    %v185 = vadd.f32 %v151, %v184
    %186 = vmatmul.f32.gmra.mxu0 %v90
    %v187 = vpop.f32.mrf.mxu0
    %v188 = vadd.f32 %v151, %v187
    %189 = vmatmul.f32.gmra.mxu0 %v91
    %v190 = vpop.f32.mrf.mxu0
    %v191 = vadd.f32 %v151, %v190
    %192 = vmatmul.f32.gmra.mxu0 %v92
    %v193 = vpop.f32.mrf.mxu0
    %v194 = vadd.f32 %v151, %v193
    %195 = vmatmul.f32.gmra.mxu0 %v93
    %v196 = vpop.f32.mrf.mxu0
    %v197 = vadd.f32 %v151, %v196
    %198 = vmatmul.f32.gmra.mxu0 %v94
    %v199 = vpop.f32.mrf.mxu0
    %v200 = vadd.f32 %v151, %v199
    %201 = vmatmul.f32.gmra.mxu0 %v95
    %v202 = vpop.f32.mrf.mxu0
    %v203 = vadd.f32 %v151, %v202
    %204 = vmatmul.f32.gmra.mxu0 %v96
    %v205 = vpop.f32.mrf.mxu0
    %v206 = vadd.f32 %v151, %v205
    %207 = vmatmul.f32.gmra.mxu0 %v97
    %v208 = vpop.f32.mrf.mxu0
    %v209 = vadd.f32 %v151, %v208
    %210 = vmatmul.f32.gmra.mxu0 %v98
    %v211 = vpop.f32.mrf.mxu0
    %v212 = vadd.f32 %v151, %v211
    %213 = vmatmul.f32.gmra.mxu0 %v99
    %v214 = vpop.f32.mrf.mxu0
    %v215 = vadd.f32 %v151, %v214
    %216 = vmatmul.f32.gmra.mxu0 %v100
    %v217 = vpop.f32.mrf.mxu0
    %v218 = vadd.f32 %v151, %v217
    %219 = vmatmul.f32.gmra.mxu0 %v101
    %v220 = vpop.f32.mrf.mxu0
    %v221 = vadd.f32 %v151, %v220
    %222 = vmatmul.f32.gmra.mxu0 %v102
    %v223 = vpop.f32.mrf.mxu0
    %v224 = vadd.f32 %v151, %v223
    %225 = vmatmul.f32.gmra.mxu0 %v103
    %v226 = vpop.f32.mrf.mxu0
    %v227 = vadd.f32 %v151, %v226
    %228 = vmatmul.f32.gmra.mxu0 %v104
    %v229 = vpop.f32.mrf.mxu0
    %v230 = vadd.f32 %v151, %v229
    %231 = vmatmul.f32.gmra.mxu0 %v105
    %v232 = vpop.f32.mrf.mxu0
    %v233 = vadd.f32 %v151, %v232
    %234 = vmatmul.f32.gmra.mxu0 %v106
    %v235 = vpop.f32.mrf.mxu0
    %v236 = vadd.f32 %v151, %v235
    %237 = vmatmul.f32.gmra.mxu0 %v107
    %v238 = vpop.f32.mrf.mxu0
    %v239 = vadd.f32 %v151, %v238
    %240 = vmatmul.f32.gmra.mxu0 %v108
    %v241 = vpop.f32.mrf.mxu0
    %v242 = vadd.f32 %v151, %v241
    %243 = vmatmul.f32.gmra.mxu0 %v109
    %v244 = vpop.f32.mrf.mxu0
    %v245 = vadd.f32 %v151, %v244
    %246 = vmatmul.f32.gmra.mxu0 %v110
    %v247 = vpop.f32.mrf.mxu0
    %v248 = vadd.f32 %v151, %v247
    %249 = vmatmul.f32.gmra.mxu0 %v111
    %v250 = vpop.f32.mrf.mxu0
    %v251 = vadd.f32 %v151, %v250
    %252 = vmatmul.f32.gmra.mxu0 %v112
    %v253 = vpop.f32.mrf.mxu0
    %v254 = vadd.f32 %v151, %v253
    %255 = vmatmul.f32.gmra.mxu0 %v113
    %v256 = vpop.f32.mrf.mxu0
    %v257 = vadd.f32 %v151, %v256
    %258 = vmatmul.f32.gmra.mxu0 %v114
    %v259 = vpop.f32.mrf.mxu0
    %v260 = vadd.f32 %v151, %v259
    %261 = vmatmul.f32.gmra.mxu0 %v115
    %v262 = vpop.f32.mrf.mxu0
    %v263 = vadd.f32 %v151, %v262
    %264 = vmatmul.f32.gmra.mxu0 %v116
    %v265 = vpop.f32.mrf.mxu0
    %v266 = vadd.f32 %v151, %v265
    %267 = vdwg.mxu0
    %268 = vmatpush.msra.mxu0 %v148
    %269 = vmatpush.msra.mxu0 %v146
    %270 = vmatpush.msra.mxu0 %v144
    %271 = vmatpush.msra.mxu0 %v142
    %272 = vmatpush.msra.mxu0 %v140
    %273 = vmatpush.msra.mxu0 %v138
    %274 = vmatpush.msra.mxu0 %v136
    %275 = vmatpush.msra.mxu0 %v134
    %276 = vmatpush.msra.mxu0 %v132
    %277 = vmatpush.msra.mxu0 %v130
    %278 = vmatpush.msra.mxu0 %v128
    %279 = vmatpush.msra.mxu0 %v126
    %280 = vmatpush.msra.mxu0 %v124
    %281 = vmatpush.msra.mxu0 %v122
    %282 = vmatpush.msra.mxu0 %v120
    %283 = vmatpush.msra.mxu0 %v118
    %284 = vmatmul.f32.gmra.mxu0 %v85
    %v285 = vpop.f32.mrf.mxu0
    %v286 = vadd.f32 %v152, %v285
    %287 = vmatmul.f32.gmra.mxu0 %v86
    %v288 = vpop.f32.mrf.mxu0
    %v289 = vadd.f32 %v152, %v288
    %290 = vmatmul.f32.gmra.mxu0 %v87
    %v291 = vpop.f32.mrf.mxu0
    %v292 = vadd.f32 %v152, %v291
    %293 = vmatmul.f32.gmra.mxu0 %v88
    %v294 = vpop.f32.mrf.mxu0
    %v295 = vadd.f32 %v152, %v294
    %296 = vmatmul.f32.gmra.mxu0 %v89
    %v297 = vpop.f32.mrf.mxu0
    %v298 = vadd.f32 %v152, %v297
    %299 = vmatmul.f32.gmra.mxu0 %v90
    %v300 = vpop.f32.mrf.mxu0
    %v301 = vadd.f32 %v152, %v300
    %302 = vmatmul.f32.gmra.mxu0 %v91
    %v303 = vpop.f32.mrf.mxu0
    %v304 = vadd.f32 %v152, %v303
    %305 = vmatmul.f32.gmra.mxu0 %v92
    %v306 = vpop.f32.mrf.mxu0
    %v307 = vadd.f32 %v152, %v306
    %308 = vmatmul.f32.gmra.mxu0 %v93
    %v309 = vpop.f32.mrf.mxu0
    %v310 = vadd.f32 %v152, %v309
    %311 = vmatmul.f32.gmra.mxu0 %v94
    %v312 = vpop.f32.mrf.mxu0
    %v313 = vadd.f32 %v152, %v312
    %314 = vmatmul.f32.gmra.mxu0 %v95
    %v315 = vpop.f32.mrf.mxu0
    %v316 = vadd.f32 %v152, %v315
    %317 = vmatmul.f32.gmra.mxu0 %v96
    %v318 = vpop.f32.mrf.mxu0
    %v319 = vadd.f32 %v152, %v318
    %320 = vmatmul.f32.gmra.mxu0 %v97
    %v321 = vpop.f32.mrf.mxu0
    %v322 = vadd.f32 %v152, %v321
    %323 = vmatmul.f32.gmra.mxu0 %v98
    %v324 = vpop.f32.mrf.mxu0
    %v325 = vadd.f32 %v152, %v324
    %326 = vmatmul.f32.gmra.mxu0 %v99
    %v327 = vpop.f32.mrf.mxu0
    %v328 = vadd.f32 %v152, %v327
    %329 = vmatmul.f32.gmra.mxu0 %v100
    %v330 = vpop.f32.mrf.mxu0
    %v331 = vadd.f32 %v152, %v330
    %332 = vmatmul.f32.gmra.mxu0 %v101
    %v333 = vpop.f32.mrf.mxu0
    %v334 = vadd.f32 %v152, %v333
    %335 = vmatmul.f32.gmra.mxu0 %v102
    %v336 = vpop.f32.mrf.mxu0
    %v337 = vadd.f32 %v152, %v336
    %338 = vmatmul.f32.gmra.mxu0 %v103
    %v339 = vpop.f32.mrf.mxu0
    %v340 = vadd.f32 %v152, %v339
    %341 = vmatmul.f32.gmra.mxu0 %v104
    %v342 = vpop.f32.mrf.mxu0
    %v343 = vadd.f32 %v152, %v342
    %344 = vmatmul.f32.gmra.mxu0 %v105
    %v345 = vpop.f32.mrf.mxu0
    %v346 = vadd.f32 %v152, %v345
    %347 = vmatmul.f32.gmra.mxu0 %v106
    %v348 = vpop.f32.mrf.mxu0
    %v349 = vadd.f32 %v152, %v348
    %350 = vmatmul.f32.gmra.mxu0 %v107
    %v351 = vpop.f32.mrf.mxu0
    %v352 = vadd.f32 %v152, %v351
    %353 = vmatmul.f32.gmra.mxu0 %v108
    %v354 = vpop.f32.mrf.mxu0
    %v355 = vadd.f32 %v152, %v354
    %356 = vmatmul.f32.gmra.mxu0 %v109
    %v357 = vpop.f32.mrf.mxu0
    %v358 = vadd.f32 %v152, %v357
    %359 = vmatmul.f32.gmra.mxu0 %v110
    %v360 = vpop.f32.mrf.mxu0
    %v361 = vadd.f32 %v152, %v360
    %362 = vmatmul.f32.gmra.mxu0 %v111
    %v363 = vpop.f32.mrf.mxu0
    %v364 = vadd.f32 %v152, %v363
    %365 = vmatmul.f32.gmra.mxu0 %v112
    %v366 = vpop.f32.mrf.mxu0
    %v367 = vadd.f32 %v152, %v366
    %368 = vmatmul.f32.gmra.mxu0 %v113
    %v369 = vpop.f32.mrf.mxu0
    %v370 = vadd.f32 %v152, %v369
    %371 = vmatmul.f32.gmra.mxu0 %v114
    %v372 = vpop.f32.mrf.mxu0
    %v373 = vadd.f32 %v152, %v372
    %374 = vmatmul.f32.gmra.mxu0 %v115
    %v375 = vpop.f32.mrf.mxu0
    %v376 = vadd.f32 %v152, %v375
    %377 = vmatmul.f32.gmra.mxu0 %v116
    %v378 = vpop.f32.mrf.mxu0
    %v379 = vadd.f32 %v152, %v378
    %380 = vdwg.mxu0
    %v381 = vmax.f32 %v173, 0.0
    %v382 = vmax.f32 %v286, 0.0
    %v383 = vmax.f32 %v176, 0.0
    %v384 = vmax.f32 %v289, 0.0
    %v385 = vmax.f32 %v179, 0.0
    %v386 = vmax.f32 %v292, 0.0
    %v387 = vmax.f32 %v182, 0.0
    %v388 = vmax.f32 %v295, 0.0
    %v389 = vmax.f32 %v185, 0.0
    %v390 = vmax.f32 %v298, 0.0
    %v391 = vmax.f32 %v188, 0.0
    %v392 = vmax.f32 %v301, 0.0
    %v393 = vmax.f32 %v191, 0.0
    %v394 = vmax.f32 %v304, 0.0
    %v395 = vmax.f32 %v194, 0.0
    %v396 = vmax.f32 %v307, 0.0
    %v397 = vmax.f32 %v197, 0.0
    %v398 = vmax.f32 %v310, 0.0
    %v399 = vmax.f32 %v200, 0.0
    %v400 = vmax.f32 %v313, 0.0
    %v401 = vmax.f32 %v203, 0.0
    %v402 = vmax.f32 %v316, 0.0
    %v403 = vmax.f32 %v206, 0.0
    %v404 = vmax.f32 %v319, 0.0
    %v405 = vmax.f32 %v209, 0.0
    %v406 = vmax.f32 %v322, 0.0
    %v407 = vmax.f32 %v212, 0.0
    %v408 = vmax.f32 %v325, 0.0
    %v409 = vmax.f32 %v215, 0.0
    %v410 = vmax.f32 %v328, 0.0
    %v411 = vmax.f32 %v218, 0.0
    %v412 = vmax.f32 %v331, 0.0
    %v413 = vmax.f32 %v221, 0.0
    %v414 = vmax.f32 %v334, 0.0
    %v415 = vmax.f32 %v224, 0.0
    %v416 = vmax.f32 %v337, 0.0
    %v417 = vmax.f32 %v227, 0.0
    %v418 = vmax.f32 %v340, 0.0
    %v419 = vmax.f32 %v230, 0.0
    %v420 = vmax.f32 %v343, 0.0
    %v421 = vmax.f32 %v233, 0.0
    %v422 = vmax.f32 %v346, 0.0
    %v423 = vmax.f32 %v236, 0.0
    %v424 = vmax.f32 %v349, 0.0
    %v425 = vmax.f32 %v239, 0.0
    %v426 = vmax.f32 %v352, 0.0
    %v427 = vmax.f32 %v242, 0.0
    %v428 = vmax.f32 %v355, 0.0
    %v429 = vmax.f32 %v245, 0.0
    %v430 = vmax.f32 %v358, 0.0
    %v431 = vmax.f32 %v248, 0.0
    %v432 = vmax.f32 %v361, 0.0
    %v433 = vmax.f32 %v251, 0.0
    %v434 = vmax.f32 %v364, 0.0
    %v435 = vmax.f32 %v254, 0.0
    %v436 = vmax.f32 %v367, 0.0
    %v437 = vmax.f32 %v257, 0.0
    %v438 = vmax.f32 %v370, 0.0
    %v439 = vmax.f32 %v260, 0.0
    %v440 = vmax.f32 %v373, 0.0
    %v441 = vmax.f32 %v263, 0.0
    %v442 = vmax.f32 %v376, 0.0
    %v443 = vmax.f32 %v266, 0.0
    %v444 = vmax.f32 %v379, 0.0
    %v445 = vmin.f32 %v381, 1.0
    %v446 = vmin.f32 %v382, 1.0
    %v447 = vmin.f32 %v383, 1.0
    %v448 = vmin.f32 %v384, 1.0
    %v449 = vmin.f32 %v385, 1.0
    %v450 = vmin.f32 %v386, 1.0
    %v451 = vmin.f32 %v387, 1.0
    %v452 = vmin.f32 %v388, 1.0
    %v453 = vmin.f32 %v389, 1.0
    %v454 = vmin.f32 %v390, 1.0
    %v455 = vmin.f32 %v391, 1.0
    %v456 = vmin.f32 %v392, 1.0
    %v457 = vmin.f32 %v393, 1.0
    %v458 = vmin.f32 %v394, 1.0
    %v459 = vmin.f32 %v395, 1.0
    %v460 = vmin.f32 %v396, 1.0
    %v461 = vmin.f32 %v397, 1.0
    %v462 = vmin.f32 %v398, 1.0
    %v463 = vmin.f32 %v399, 1.0
    %v464 = vmin.f32 %v400, 1.0
    %v465 = vmin.f32 %v401, 1.0
    %v466 = vmin.f32 %v402, 1.0
    %v467 = vmin.f32 %v403, 1.0
    %v468 = vmin.f32 %v404, 1.0
    %v469 = vmin.f32 %v405, 1.0
    %v470 = vmin.f32 %v406, 1.0
    %v471 = vmin.f32 %v407, 1.0
    %v472 = vmin.f32 %v408, 1.0
    %v473 = vmin.f32 %v409, 1.0
    %v474 = vmin.f32 %v410, 1.0
    %v475 = vmin.f32 %v411, 1.0
    %v476 = vmin.f32 %v412, 1.0
    %v477 = vmin.f32 %v413, 1.0
    %v478 = vmin.f32 %v414, 1.0
    %v479 = vmin.f32 %v415, 1.0
    %v480 = vmin.f32 %v416, 1.0
    %v481 = vmin.f32 %v417, 1.0
    %v482 = vmin.f32 %v418, 1.0
    %v483 = vmin.f32 %v419, 1.0
    %v484 = vmin.f32 %v420, 1.0
    %v485 = vmin.f32 %v421, 1.0
    %v486 = vmin.f32 %v422, 1.0
    %v487 = vmin.f32 %v423, 1.0
    %v488 = vmin.f32 %v424, 1.0
    %v489 = vmin.f32 %v425, 1.0
    %v490 = vmin.f32 %v426, 1.0
    %v491 = vmin.f32 %v427, 1.0
    %v492 = vmin.f32 %v428, 1.0
    %v493 = vmin.f32 %v429, 1.0
    %v494 = vmin.f32 %v430, 1.0
    %v495 = vmin.f32 %v431, 1.0
    %v496 = vmin.f32 %v432, 1.0
    %v497 = vmin.f32 %v433, 1.0
    %v498 = vmin.f32 %v434, 1.0
    %v499 = vmin.f32 %v435, 1.0
    %v500 = vmin.f32 %v436, 1.0
    %v501 = vmin.f32 %v437, 1.0
    %v502 = vmin.f32 %v438, 1.0
    %v503 = vmin.f32 %v439, 1.0
    %v504 = vmin.f32 %v440, 1.0
    %v505 = vmin.f32 %v441, 1.0
    %v506 = vmin.f32 %v442, 1.0
    %v507 = vmin.f32 %v443, 1.0
    %v508 = vmin.f32 %v444, 1.0
    %509 = vst [vmem:[#allocation11] sm:$0xff] %v445
    %510 = vst [vmem:[#allocation11 + $0x8] sm:$0xff] %v446
    %511 = vst [vmem:[#allocation11 + $0x10] sm:$0xff] %v447
    %512 = vst [vmem:[#allocation11 + $0x18] sm:$0xff] %v448
    %513 = vst [vmem:[#allocation11 + $0x20] sm:$0xff] %v449
    %514 = vst [vmem:[#allocation11 + $0x28] sm:$0xff] %v450
    %515 = vst [vmem:[#allocation11 + $0x30] sm:$0xff] %v451
    %516 = vst [vmem:[#allocation11 + $0x38] sm:$0xff] %v452
    %517 = vst [vmem:[#allocation11 + $0x40] sm:$0xff] %v453
    %518 = vst [vmem:[#allocation11 + $0x48] sm:$0xff] %v454
    %519 = vst [vmem:[#allocation11 + $0x50] sm:$0xff] %v455
    %520 = vst [vmem:[#allocation11 + $0x58] sm:$0xff] %v456
    %521 = vst [vmem:[#allocation11 + $0x60] sm:$0xff] %v457
    %522 = vst [vmem:[#allocation11 + $0x68] sm:$0xff] %v458
    %523 = vst [vmem:[#allocation11 + $0x70] sm:$0xff] %v459
    %524 = vst [vmem:[#allocation11 + $0x78] sm:$0xff] %v460
    %525 = vst [vmem:[#allocation11 + $0x80] sm:$0xff] %v461
    %526 = vst [vmem:[#allocation11 + $0x88] sm:$0xff] %v462
    %527 = vst [vmem:[#allocation11 + $0x90] sm:$0xff] %v463
    %528 = vst [vmem:[#allocation11 + $0x98] sm:$0xff] %v464
    %529 = vst [vmem:[#allocation11 + $0xa0] sm:$0xff] %v465
    %530 = vst [vmem:[#allocation11 + $0xa8] sm:$0xff] %v466
    %531 = vst [vmem:[#allocation11 + $0xb0] sm:$0xff] %v467
    %532 = vst [vmem:[#allocation11 + $0xb8] sm:$0xff] %v468
    %533 = vst [vmem:[#allocation11 + $0xc0] sm:$0xff] %v469
    %534 = vst [vmem:[#allocation11 + $0xc8] sm:$0xff] %v470
    %535 = vst [vmem:[#allocation11 + $0xd0] sm:$0xff] %v471
    %536 = vst [vmem:[#allocation11 + $0xd8] sm:$0xff] %v472
    %537 = vst [vmem:[#allocation11 + $0xe0] sm:$0xff] %v473
    %538 = vst [vmem:[#allocation11 + $0xe8] sm:$0xff] %v474
    %539 = vst [vmem:[#allocation11 + $0xf0] sm:$0xff] %v475
    %540 = vst [vmem:[#allocation11 + $0xf8] sm:$0xff] %v476
    %541 = vst [vmem:[#allocation11 + $0x100] sm:$0xff] %v477
    %542 = vst [vmem:[#allocation11 + $0x108] sm:$0xff] %v478
    %543 = vst [vmem:[#allocation11 + $0x110] sm:$0xff] %v479
    %544 = vst [vmem:[#allocation11 + $0x118] sm:$0xff] %v480
    %545 = vst [vmem:[#allocation11 + $0x120] sm:$0xff] %v481
    %546 = vst [vmem:[#allocation11 + $0x128] sm:$0xff] %v482
    %547 = vst [vmem:[#allocation11 + $0x130] sm:$0xff] %v483
    %548 = vst [vmem:[#allocation11 + $0x138] sm:$0xff] %v484
    %549 = vst [vmem:[#allocation11 + $0x140] sm:$0xff] %v485
    %550 = vst [vmem:[#allocation11 + $0x148] sm:$0xff] %v486
    %551 = vst [vmem:[#allocation11 + $0x150] sm:$0xff] %v487
    %552 = vst [vmem:[#allocation11 + $0x158] sm:$0xff] %v488
    %553 = vst [vmem:[#allocation11 + $0x160] sm:$0xff] %v489
    %554 = vst [vmem:[#allocation11 + $0x168] sm:$0xff] %v490
    %555 = vst [vmem:[#allocation11 + $0x170] sm:$0xff] %v491
    %556 = vst [vmem:[#allocation11 + $0x178] sm:$0xff] %v492
    %557 = vst [vmem:[#allocation11 + $0x180] sm:$0xff] %v493
    %558 = vst [vmem:[#allocation11 + $0x188] sm:$0xff] %v494
    %559 = vst [vmem:[#allocation11 + $0x190] sm:$0xff] %v495
    %560 = vst [vmem:[#allocation11 + $0x198] sm:$0xff] %v496
    %561 = vst [vmem:[#allocation11 + $0x1a0] sm:$0xff] %v497
    %562 = vst [vmem:[#allocation11 + $0x1a8] sm:$0xff] %v498
    %563 = vst [vmem:[#allocation11 + $0x1b0] sm:$0xff] %v499
    %564 = vst [vmem:[#allocation11 + $0x1b8] sm:$0xff] %v500
    %565 = vst [vmem:[#allocation11 + $0x1c0] sm:$0xff] %v501
    %566 = vst [vmem:[#allocation11 + $0x1c8] sm:$0xff] %v502
    %567 = vst [vmem:[#allocation11 + $0x1d0] sm:$0xff] %v503
    %568 = vst [vmem:[#allocation11 + $0x1d8] sm:$0xff] %v504
    %569 = vst [vmem:[#allocation11 + $0x1e0] sm:$0xff] %v505
    %570 = vst [vmem:[#allocation11 + $0x1e8] sm:$0xff] %v506
    %571 = vst [vmem:[#allocation11 + $0x1f0] sm:$0xff] %v507
    %572 = vst [vmem:[#allocation11 + $0x1f8] sm:$0xff] %v508
    %v573 = vld [vmem:[#allocation8] sm:$0xff]
    %v574 = vld [vmem:[#allocation8 + $0x8] sm:$0xff]
    %v575 = vld [vmem:[#allocation8 + $0x10] sm:$0xff]
    %v576 = vld [vmem:[#allocation8 + $0x18] sm:$0xff]
    %v577 = vld [vmem:[#allocation8 + $0x20] sm:$0xff]
    %v578 = vld [vmem:[#allocation8 + $0x28] sm:$0xff]
    %v579 = vld [vmem:[#allocation8 + $0x30] sm:$0xff]
    %v580 = vld [vmem:[#allocation8 + $0x38] sm:$0xff]
    %v581 = vld [vmem:[#allocation8 + $0x40] sm:$0xff]
    %v582 = vld [vmem:[#allocation8 + $0x48] sm:$0xff]
    %v583 = vld [vmem:[#allocation8 + $0x50] sm:$0xff]
    %v584 = vld [vmem:[#allocation8 + $0x58] sm:$0xff]
    %v585 = vld [vmem:[#allocation8 + $0x60] sm:$0xff]
    %v586 = vld [vmem:[#allocation8 + $0x68] sm:$0xff]
    %v587 = vld [vmem:[#allocation8 + $0x70] sm:$0xff]
    %v588 = vld [vmem:[#allocation8 + $0x78] sm:$0xff]
    %v589 = vld [vmem:[#allocation8 + $0x80] sm:$0xff]
    %v590 = vld [vmem:[#allocation8 + $0x88] sm:$0xff]
    %v591 = vld [vmem:[#allocation8 + $0x90] sm:$0xff]
    %v592 = vld [vmem:[#allocation8 + $0x98] sm:$0xff]
    %v593 = vld [vmem:[#allocation8 + $0xa0] sm:$0xff]
    %v594 = vld [vmem:[#allocation8 + $0xa8] sm:$0xff]
    %v595 = vld [vmem:[#allocation8 + $0xb0] sm:$0xff]
    %v596 = vld [vmem:[#allocation8 + $0xb8] sm:$0xff]
    %v597 = vld [vmem:[#allocation8 + $0xc0] sm:$0xff]
    %v598 = vld [vmem:[#allocation8 + $0xc8] sm:$0xff]
    %v599 = vld [vmem:[#allocation8 + $0xd0] sm:$0xff]
    %v600 = vld [vmem:[#allocation8 + $0xd8] sm:$0xff]
    %v601 = vld [vmem:[#allocation8 + $0xe0] sm:$0xff]
    %v602 = vld [vmem:[#allocation8 + $0xe8] sm:$0xff]
    %v603 = vld [vmem:[#allocation8 + $0xf0] sm:$0xff]
    %v604 = vld [vmem:[#allocation8 + $0xf8] sm:$0xff]
    %v605 = vld [vmem:[%s4] sm:$0x1]
    %v607 = vperm.slane %v605, 0
    %609 = vmatpush.msra.mxu0 %v588
    %610 = vmatpush.msra.mxu0 %v587
    %611 = vmatpush.msra.mxu0 %v586
    %612 = vmatpush.msra.mxu0 %v585
    %613 = vmatpush.msra.mxu0 %v584
    %614 = vmatpush.msra.mxu0 %v583
    %615 = vmatpush.msra.mxu0 %v582
    %616 = vmatpush.msra.mxu0 %v581
    %617 = vmatpush.msra.mxu0 %v580
    %618 = vmatpush.msra.mxu0 %v579
    %619 = vmatpush.msra.mxu0 %v578
    %620 = vmatpush.msra.mxu0 %v577
    %621 = vmatpush.msra.mxu0 %v576
    %622 = vmatpush.msra.mxu0 %v575
    %623 = vmatpush.msra.mxu0 %v574
    %624 = vmatpush.msra.mxu0 %v573
    %625 = vmatmul.f32.gmra.mxu0 %v445
    %v626 = vpop.f32.mrf.mxu0
    %v627 = vadd.f32 %v607, %v626
    %628 = vmatmul.f32.gmra.mxu0 %v447
    %v629 = vpop.f32.mrf.mxu0
    %v630 = vadd.f32 %v607, %v629
    %631 = vmatmul.f32.gmra.mxu0 %v449
    %v632 = vpop.f32.mrf.mxu0
    %v633 = vadd.f32 %v607, %v632
    %634 = vmatmul.f32.gmra.mxu0 %v451
    %v635 = vpop.f32.mrf.mxu0
    %v636 = vadd.f32 %v607, %v635
    %637 = vmatmul.f32.gmra.mxu0 %v453
    %v638 = vpop.f32.mrf.mxu0
    %v639 = vadd.f32 %v607, %v638
    %640 = vmatmul.f32.gmra.mxu0 %v455
    %v641 = vpop.f32.mrf.mxu0
    %v642 = vadd.f32 %v607, %v641
    %643 = vmatmul.f32.gmra.mxu0 %v457
    %v644 = vpop.f32.mrf.mxu0
    %v645 = vadd.f32 %v607, %v644
    %646 = vmatmul.f32.gmra.mxu0 %v459
    %v647 = vpop.f32.mrf.mxu0
    %v648 = vadd.f32 %v607, %v647
    %649 = vmatmul.f32.gmra.mxu0 %v461
    %v650 = vpop.f32.mrf.mxu0
    %v651 = vadd.f32 %v607, %v650
    %652 = vmatmul.f32.gmra.mxu0 %v463
    %v653 = vpop.f32.mrf.mxu0
    %v654 = vadd.f32 %v607, %v653
    %655 = vmatmul.f32.gmra.mxu0 %v465
    %v656 = vpop.f32.mrf.mxu0
    %v657 = vadd.f32 %v607, %v656
    %658 = vmatmul.f32.gmra.mxu0 %v467
    %v659 = vpop.f32.mrf.mxu0
    %v660 = vadd.f32 %v607, %v659
    %661 = vmatmul.f32.gmra.mxu0 %v469
    %v662 = vpop.f32.mrf.mxu0
    %v663 = vadd.f32 %v607, %v662
    %664 = vmatmul.f32.gmra.mxu0 %v471
    %v665 = vpop.f32.mrf.mxu0
    %v666 = vadd.f32 %v607, %v665
    %667 = vmatmul.f32.gmra.mxu0 %v473
    %v668 = vpop.f32.mrf.mxu0
    %v669 = vadd.f32 %v607, %v668
    %670 = vmatmul.f32.gmra.mxu0 %v475
    %v671 = vpop.f32.mrf.mxu0
    %v672 = vadd.f32 %v607, %v671
    %673 = vmatmul.f32.gmra.mxu0 %v477
    %v674 = vpop.f32.mrf.mxu0
    %v675 = vadd.f32 %v607, %v674
    %676 = vmatmul.f32.gmra.mxu0 %v479
    %v677 = vpop.f32.mrf.mxu0
    %v678 = vadd.f32 %v607, %v677
    %679 = vmatmul.f32.gmra.mxu0 %v481
    %v680 = vpop.f32.mrf.mxu0
    %v681 = vadd.f32 %v607, %v680
    %682 = vmatmul.f32.gmra.mxu0 %v483
    %v683 = vpop.f32.mrf.mxu0
    %v684 = vadd.f32 %v607, %v683
    %685 = vmatmul.f32.gmra.mxu0 %v485
    %v686 = vpop.f32.mrf.mxu0
    %v687 = vadd.f32 %v607, %v686
    %688 = vmatmul.f32.gmra.mxu0 %v487
    %v689 = vpop.f32.mrf.mxu0
    %v690 = vadd.f32 %v607, %v689
    %691 = vmatmul.f32.gmra.mxu0 %v489
    %v692 = vpop.f32.mrf.mxu0
    %v693 = vadd.f32 %v607, %v692
    %694 = vmatmul.f32.gmra.mxu0 %v491
    %v695 = vpop.f32.mrf.mxu0
    %v696 = vadd.f32 %v607, %v695
    %697 = vmatmul.f32.gmra.mxu0 %v493
    %v698 = vpop.f32.mrf.mxu0
    %v699 = vadd.f32 %v607, %v698
    %700 = vmatmul.f32.gmra.mxu0 %v495
    %v701 = vpop.f32.mrf.mxu0
    %v702 = vadd.f32 %v607, %v701
    %703 = vmatmul.f32.gmra.mxu0 %v497
    %v704 = vpop.f32.mrf.mxu0
    %v705 = vadd.f32 %v607, %v704
    %706 = vmatmul.f32.gmra.mxu0 %v499
    %v707 = vpop.f32.mrf.mxu0
    %v708 = vadd.f32 %v607, %v707
    %709 = vmatmul.f32.gmra.mxu0 %v501
    %v710 = vpop.f32.mrf.mxu0
    %v711 = vadd.f32 %v607, %v710
    %712 = vmatmul.f32.gmra.mxu0 %v503
    %v713 = vpop.f32.mrf.mxu0
    %v714 = vadd.f32 %v607, %v713
    %715 = vmatmul.f32.gmra.mxu0 %v505
    %v716 = vpop.f32.mrf.mxu0
    %v717 = vadd.f32 %v607, %v716
    %718 = vmatmul.f32.gmra.mxu0 %v507
    %v719 = vpop.f32.mrf.mxu0
    %v720 = vadd.f32 %v607, %v719
    %721 = vdwg.mxu0
    %722 = vmatpush.msra.mxu0 %v604
    %723 = vmatpush.msra.mxu0 %v603
    %724 = vmatpush.msra.mxu0 %v602
    %725 = vmatpush.msra.mxu0 %v601
    %726 = vmatpush.msra.mxu0 %v600
    %727 = vmatpush.msra.mxu0 %v599
    %728 = vmatpush.msra.mxu0 %v598
    %729 = vmatpush.msra.mxu0 %v597
    %730 = vmatpush.msra.mxu0 %v596
    %731 = vmatpush.msra.mxu0 %v595
    %732 = vmatpush.msra.mxu0 %v594
    %733 = vmatpush.msra.mxu0 %v593
    %734 = vmatpush.msra.mxu0 %v592
    %735 = vmatpush.msra.mxu0 %v591
    %736 = vmatpush.msra.mxu0 %v590
    %737 = vmatpush.msra.mxu0 %v589
    %738 = vmatmul.f32.gmra.mxu0 %v446
    %v739 = vpop.f32.mrf.mxu0
    %v740 = vadd.f32 %v627, %v739
    %741 = vmatmul.f32.gmra.mxu0 %v448
    %v742 = vpop.f32.mrf.mxu0
    %v743 = vadd.f32 %v630, %v742
    %744 = vmatmul.f32.gmra.mxu0 %v450
    %v745 = vpop.f32.mrf.mxu0
    %v746 = vadd.f32 %v633, %v745
    %747 = vmatmul.f32.gmra.mxu0 %v452
    %v748 = vpop.f32.mrf.mxu0
    %v749 = vadd.f32 %v636, %v748
    %750 = vmatmul.f32.gmra.mxu0 %v454
    %v751 = vpop.f32.mrf.mxu0
    %v752 = vadd.f32 %v639, %v751
    %753 = vmatmul.f32.gmra.mxu0 %v456
    %v754 = vpop.f32.mrf.mxu0
    %v755 = vadd.f32 %v642, %v754
    %756 = vmatmul.f32.gmra.mxu0 %v458
    %v757 = vpop.f32.mrf.mxu0
    %v758 = vadd.f32 %v645, %v757
    %759 = vmatmul.f32.gmra.mxu0 %v460
    %v760 = vpop.f32.mrf.mxu0
    %v761 = vadd.f32 %v648, %v760
    %762 = vmatmul.f32.gmra.mxu0 %v462
    %v763 = vpop.f32.mrf.mxu0
    %v764 = vadd.f32 %v651, %v763
    %765 = vmatmul.f32.gmra.mxu0 %v464
    %v766 = vpop.f32.mrf.mxu0
    %v767 = vadd.f32 %v654, %v766
    %768 = vmatmul.f32.gmra.mxu0 %v466
    %v769 = vpop.f32.mrf.mxu0
    %v770 = vadd.f32 %v657, %v769
    %771 = vmatmul.f32.gmra.mxu0 %v468
    %v772 = vpop.f32.mrf.mxu0
    %v773 = vadd.f32 %v660, %v772
    %774 = vmatmul.f32.gmra.mxu0 %v470
    %v775 = vpop.f32.mrf.mxu0
    %v776 = vadd.f32 %v663, %v775
    %777 = vmatmul.f32.gmra.mxu0 %v472
    %v778 = vpop.f32.mrf.mxu0
    %v779 = vadd.f32 %v666, %v778
    %780 = vmatmul.f32.gmra.mxu0 %v474
    %v781 = vpop.f32.mrf.mxu0
    %v782 = vadd.f32 %v669, %v781
    %783 = vmatmul.f32.gmra.mxu0 %v476
    %v784 = vpop.f32.mrf.mxu0
    %v785 = vadd.f32 %v672, %v784
    %786 = vmatmul.f32.gmra.mxu0 %v478
    %v787 = vpop.f32.mrf.mxu0
    %v788 = vadd.f32 %v675, %v787
    %789 = vmatmul.f32.gmra.mxu0 %v480
    %v790 = vpop.f32.mrf.mxu0
    %v791 = vadd.f32 %v678, %v790
    %792 = vmatmul.f32.gmra.mxu0 %v482
    %v793 = vpop.f32.mrf.mxu0
    %v794 = vadd.f32 %v681, %v793
    %795 = vmatmul.f32.gmra.mxu0 %v484
    %v796 = vpop.f32.mrf.mxu0
    %v797 = vadd.f32 %v684, %v796
    %798 = vmatmul.f32.gmra.mxu0 %v486
    %v799 = vpop.f32.mrf.mxu0
    %v800 = vadd.f32 %v687, %v799
    %801 = vmatmul.f32.gmra.mxu0 %v488
    %v802 = vpop.f32.mrf.mxu0
    %v803 = vadd.f32 %v690, %v802
    %804 = vmatmul.f32.gmra.mxu0 %v490
    %v805 = vpop.f32.mrf.mxu0
    %v806 = vadd.f32 %v693, %v805
    %807 = vmatmul.f32.gmra.mxu0 %v492
    %v808 = vpop.f32.mrf.mxu0
    %v809 = vadd.f32 %v696, %v808
    %810 = vmatmul.f32.gmra.mxu0 %v494
    %v811 = vpop.f32.mrf.mxu0
    %v812 = vadd.f32 %v699, %v811
    %813 = vmatmul.f32.gmra.mxu0 %v496
    %v814 = vpop.f32.mrf.mxu0
    %v815 = vadd.f32 %v702, %v814
    %816 = vmatmul.f32.gmra.mxu0 %v498
    %v817 = vpop.f32.mrf.mxu0
    %v818 = vadd.f32 %v705, %v817
    %819 = vmatmul.f32.gmra.mxu0 %v500
    %v820 = vpop.f32.mrf.mxu0
    %v821 = vadd.f32 %v708, %v820
    %822 = vmatmul.f32.gmra.mxu0 %v502
    %v823 = vpop.f32.mrf.mxu0
    %v824 = vadd.f32 %v711, %v823
    %825 = vmatmul.f32.gmra.mxu0 %v504
    %v826 = vpop.f32.mrf.mxu0
    %v827 = vadd.f32 %v714, %v826
    %828 = vmatmul.f32.gmra.mxu0 %v506
    %v829 = vpop.f32.mrf.mxu0
    %v830 = vadd.f32 %v717, %v829
    %831 = vmatmul.f32.gmra.mxu0 %v508
    %v832 = vpop.f32.mrf.mxu0
    %v833 = vadd.f32 %v720, %v832
    %834 = vdwg.mxu0
    %835 = vst [vmem:[#allocation10] sm:$0xff] %v740
    %836 = vst [vmem:[#allocation10 + $0x8] sm:$0xff] %v743
    %837 = vst [vmem:[#allocation10 + $0x10] sm:$0xff] %v746
    %838 = vst [vmem:[#allocation10 + $0x18] sm:$0xff] %v749
    %839 = vst [vmem:[#allocation10 + $0x20] sm:$0xff] %v752
    %840 = vst [vmem:[#allocation10 + $0x28] sm:$0xff] %v755
    %841 = vst [vmem:[#allocation10 + $0x30] sm:$0xff] %v758
    %842 = vst [vmem:[#allocation10 + $0x38] sm:$0xff] %v761
    %843 = vst [vmem:[#allocation10 + $0x40] sm:$0xff] %v764
    %844 = vst [vmem:[#allocation10 + $0x48] sm:$0xff] %v767
    %845 = vst [vmem:[#allocation10 + $0x50] sm:$0xff] %v770
    %846 = vst [vmem:[#allocation10 + $0x58] sm:$0xff] %v773
    %847 = vst [vmem:[#allocation10 + $0x60] sm:$0xff] %v776
    %848 = vst [vmem:[#allocation10 + $0x68] sm:$0xff] %v779
    %849 = vst [vmem:[#allocation10 + $0x70] sm:$0xff] %v782
    %850 = vst [vmem:[#allocation10 + $0x78] sm:$0xff] %v785
    %851 = vst [vmem:[#allocation10 + $0x80] sm:$0xff] %v788
    %852 = vst [vmem:[#allocation10 + $0x88] sm:$0xff] %v791
    %853 = vst [vmem:[#allocation10 + $0x90] sm:$0xff] %v794
    %854 = vst [vmem:[#allocation10 + $0x98] sm:$0xff] %v797
    %855 = vst [vmem:[#allocation10 + $0xa0] sm:$0xff] %v800
    %856 = vst [vmem:[#allocation10 + $0xa8] sm:$0xff] %v803
    %857 = vst [vmem:[#allocation10 + $0xb0] sm:$0xff] %v806
    %858 = vst [vmem:[#allocation10 + $0xb8] sm:$0xff] %v809
    %859 = vst [vmem:[#allocation10 + $0xc0] sm:$0xff] %v812
    %860 = vst [vmem:[#allocation10 + $0xc8] sm:$0xff] %v815
    %861 = vst [vmem:[#allocation10 + $0xd0] sm:$0xff] %v818
    %862 = vst [vmem:[#allocation10 + $0xd8] sm:$0xff] %v821
    %863 = vst [vmem:[#allocation10 + $0xe0] sm:$0xff] %v824
    %864 = vst [vmem:[#allocation10 + $0xe8] sm:$0xff] %v827
    %865 = vst [vmem:[#allocation10 + $0xf0] sm:$0xff] %v830
    %866 = vst [vmem:[#allocation10 + $0xf8] sm:$0xff] %v833
    // Predicated region
    $region38: #{tpu_custom_call.1} parent=1 // pred_check
      _
    $region39: #{tpu_custom_call.1} parent=1 // pred_check_branch
      %868 = sbr.rel (0) target = $region41
    $region40: #{tpu_custom_call.1} parent=1 // pred_region
      %870 = vsyncadd [#allocation4], 0
      %s871 = sshll.u32 [#allocation10], 4
      %s872 = int_to_ptr.vmem [resolvable:$true] %s871
      %s873 = sshll.u32 %s5, 4
      %s874 = int_to_ptr.hbm [resolvable:$true] %s873
      %879 = dma.vmem_to_hbm [thread:$0]  %s872, 4096, %s874, [#allocation4], 128, 128, 8
    $region41: #{tpu_custom_call.1} parent=1 // pred_fallthru
      _
    // Predicated region
    $region42: #{tpu_custom_call.1} parent=1 // pred_check
      _
    $region43: #{tpu_custom_call.1} parent=1 // pred_check_branch
      %881 = sbr.rel (0) target = $region45
    $region44: #{tpu_custom_call.1} parent=1 // pred_region
      %883 = vsyncadd [#allocation12], 0
      %s884 = sshll.u32 [#allocation11], 4
      %s885 = int_to_ptr.vmem [resolvable:$true] %s884
      %s886 = sshll.u32 %s6, 4
      %s887 = int_to_ptr.hbm [resolvable:$true] %s886
      %892 = dma.vmem_to_hbm [thread:$0]  %s885, 8192, %s887, [#allocation12], 256, 256, 16
    $region45: #{tpu_custom_call.1} parent=1 // pred_fallthru
      _
    // Predicated region
    $region46: #{tpu_custom_call.1} parent=1 // pred_check
      _
    $region47: #{tpu_custom_call.1} parent=1 // pred_check_branch
      %894 = sbr.rel (0) target = $region49
    $region48: #{tpu_custom_call.1} parent=1 // pred_region
      %896 = dma.done [#allocation4], 4096
    $region49: #{tpu_custom_call.1} parent=1 // pred_fallthru
      _
    // Predicated region
    $region50: #{tpu_custom_call.1} parent=1 // pred_check
      _
    $region51: #{tpu_custom_call.1} parent=1 // pred_check_branch
      %898 = sbr.rel (0) target = $region53
    $region52: #{tpu_custom_call.1} parent=1 // pred_region
      %900 = dma.done [#allocation12], 8192
    $region53: #{tpu_custom_call.1} parent=1 // pred_fallthru
      _
    %901 = vsyncpa [#allocation3], 1
    %902 = vsyncpa [#allocation6], 1
    %903 = vsyncpa [#allocation9], 1
    %904 = vsyncpa [#allocation4], 1
    %905 = vsyncpa [#allocation12], 1

</llo_original>
